<compile_context>
chip_gen: v7x
topology: tpu7x:2x2x1
jax: 0.10.0
libtpu: 0.0.40
codegen_flags: <defaults>
</compile_context>

<pallas_src>
import math

import jax
import jax.numpy as jnp
from jax.experimental import pallas as pl
from jax.experimental.pallas import tpu as pltpu

_LANE = 128   # vreg lane width
_SUB = 8      # f32 sublanes per vreg


def _round_up(x, m):
    return ((x + m - 1) // m) * m


def _vmem_capacity_bytes():
    """Physical VMEM per TensorCore; conservative fallback if query fails."""
    try:
        cap = int(pltpu.get_tpu_info().vmem_capacity_bytes)
        if cap > 0:
            return cap
    except Exception:
        pass
    return 64 * 1024 * 1024   # v7x per-TC size — safe lower bound for all gens


def _tile_vmem_bytes(tile_n, tk, f_pad, c_pad):
    """Estimated VMEM for one grid step (2x buffering charged on all operands)."""
    x_b = 2 * tile_n * tk * 2          # bf16 activation tile, double-buffered
    we_b = 2 * tk * f_pad * 2          # bf16 encoder-weight K slab, double-buffered
    wl_b = 2 * f_pad * c_pad * 2       # bf16 head weight (grid-invariant)
    be_b = 2 * f_pad * 4               # f32 biases
    bl_b = 2 * c_pad * 4
    out_b = 2 * tile_n * c_pad * 4     # f32 output tile, double-buffered
    acc_b = tile_n * f_pad * 4         # f32 accumulator scratch
    return x_b + we_b + wl_b + be_b + bl_b + out_b + acc_b


def linmodel_kernel(x_ref, w_enc_ref, b_enc_ref, w_lin_ref, b_lin_ref,
                    o_ref, acc_ref):
    k = pl.program_id(1)

    @pl.when(k == 0)
    def _init():
        acc_ref[...] = jnp.zeros_like(acc_ref)

    # Stand-in encoder matmul chunk: bf16 MXU inputs, f32 accumulation.
    acc_ref[...] += jnp.dot(x_ref[...], w_enc_ref[...],
                            preferred_element_type=jnp.float32)

    @pl.when(k == pl.num_programs(1) - 1)
    def _finalize():
        # f32 bias + ReLU, bf16 head matmul with f32 accum, f32 lane-dense store.
        feat = jnp.maximum(acc_ref[...] + b_enc_ref[...], 0.0)
        out = jnp.dot(feat.astype(w_lin_ref.dtype), w_lin_ref[...],
                      preferred_element_type=jnp.float32)
        o_ref[...] = (out + b_lin_ref[...]).astype(o_ref.dtype)


def _lin_model_forward(x_nchw, w_enc, b_enc, w_lin, b_lin, *,
                       tile_n=None, tk=None):
    """x_nchw: (N, C, H, W) float32. Returns (N, n_classes) float32."""
    N = x_nchw.shape[0]
    D = int(math.prod(x_nchw.shape[1:]))
    F = w_enc.shape[1]
    C = w_lin.shape[1]

    # --- lane-dense padding of feature / class / contracting dims -------------
    F_pad = _round_up(max(F, _LANE), _LANE)
    C_pad = _round_up(max(C, _LANE), _LANE)
    D_128 = _round_up(max(D, _LANE), _LANE)

    cap = _vmem_capacity_bytes()
    budget = cap // 2   # keep the working set at <= half of physical VMEM

    # --- K (reduction over D) tile: lane-aligned, shrunk until it fits --------
    TK = _round_up(min(D_128, tk if tk is not None else 1024), _LANE)
    while TK > _LANE and _tile_vmem_bytes(_SUB, TK, F_pad, C_pad) > budget:
        TK = _round_up(TK // 2, _LANE)
    num_k = pl.cdiv(D_128, TK)
    D_pad = num_k * TK

    # --- batch tile: largest sublane multiple the budget admits ---------------
    fixed = _tile_vmem_bytes(0, TK, F_pad, C_pad)
    per_row = _tile_vmem_bytes(1, TK, F_pad, C_pad) - fixed
    tile_cap = min(tile_n if tile_n is not None else 2048, _round_up(N, _SUB))
    if N > _SUB:
        # Keep >=2 grid points so the v7x megacore has work for both TCs.
        tile_cap = min(tile_cap, _round_up((N + 1) // 2, _SUB))
    fit = (budget - fixed) // per_row if budget > fixed else _SUB
    TILE_N = max(_SUB, min(tile_cap, (fit // _SUB) * _SUB))

    num_tiles = pl.cdiv(N, TILE_N)
    N_pad = num_tiles * TILE_N

    # --- wrapper glue: flatten, zero-pad, bf16-cast MXU operands --------------
    # (Padded rows/lanes are exactly zero; jit fuses these one-time pads/casts.)
    x_flat = x_nchw.reshape(N, D)
    x_p = jnp.pad(x_flat, ((0, N_pad - N), (0, D_pad - D))).astype(jnp.bfloat16)
    w_enc_p = jnp.pad(w_enc, ((0, D_pad - D), (0, F_pad - F))).astype(jnp.bfloat16)
    w_lin_p = jnp.pad(w_lin, ((0, F_pad - F), (0, C_pad - C))).astype(jnp.bfloat16)
    b_enc_p = jnp.pad(b_enc, ((0, F_pad - F),)).reshape(1, F_pad).astype(jnp.float32)
    b_lin_p = jnp.pad(b_lin, ((0, C_pad - C),)).reshape(1, C_pad).astype(jnp.float32)

    est = _tile_vmem_bytes(TILE_N, TK, F_pad, C_pad)
    vmem_limit = int(min(0.85 * cap,
                         max(32 * 1024 * 1024, 1.5 * est + (4 << 20))))

    cost = pl.CostEstimate(
        flops=2 * N_pad * (D_pad * F_pad + F_pad * C_pad),
        transcendentals=0,
        bytes_accessed=2 * (N_pad * D_pad + D_pad * F_pad + F_pad * C_pad)
        + 4 * (F_pad + C_pad + N_pad * C_pad),
    )

    out_padded = pl.pallas_call(
        linmodel_kernel,
        out_shape=jax.ShapeDtypeStruct((N_pad, C_pad), jnp.float32),
        grid=(num_tiles, num_k),
        in_specs=[
            pl.BlockSpec((TILE_N, TK), lambda i, k: (i, k)),    # streamed x
            pl.BlockSpec((TK, F_pad), lambda i, k: (k, 0)),     # streamed w_enc slab
            pl.BlockSpec((1, F_pad), lambda i, k: (0, 0)),      # resident bias
            pl.BlockSpec((F_pad, C_pad), lambda i, k: (0, 0)),  # resident head W
            pl.BlockSpec((1, C_pad), lambda i, k: (0, 0)),      # resident head bias
        ],
        out_specs=pl.BlockSpec((TILE_N, C_pad), lambda i, k: (i, 0)),
        scratch_shapes=[pltpu.VMEM((TILE_N, F_pad), jnp.float32)],
        compiler_params=pltpu.CompilerParams(
            dimension_semantics=("parallel", "arbitrary"),
            vmem_limit_bytes=vmem_limit,
        ),
        cost_estimate=cost,
    )(x_p, w_enc_p, b_enc_p, w_lin_p, b_lin_p)

    # Padded rows/columns are exactly zero; slice back to real batch/classes.
    return out_padded[:N, :C]


# jit so the weight pads/casts are compiled into the call (not per-call HBM trips).
lin_model_forward = jax.jit(_lin_model_forward, static_argnames=("tile_n", "tk"))


if __name__ == "__main__":
    # Small shapes consistent with the module's forward.
    N, Cin, H, W = 2, 4, 16, 16
    feature_dim = 32
    n_classes = 10
    D = Cin * H * W

    key = jax.random.PRNGKey(0)
    kx, k1, k2, k3, k4 = jax.random.split(key, 5)

    x = jax.random.normal(kx, (N, Cin, H, W), dtype=jnp.float32)

    # Deterministic parameter init (PyTorch-style uniform(-1/sqrt(in), 1/sqrt(in))).
    lim_enc = 1.0 / jnp.sqrt(jnp.float32(D))
    w_enc = jax.random.uniform(k1, (D, feature_dim), jnp.float32, -lim_enc, lim_enc)
    b_enc = jax.random.uniform(k2, (feature_dim,), jnp.float32, -lim_enc, lim_enc)

    lim_lin = 1.0 / jnp.sqrt(jnp.float32(feature_dim))
    w_lin = jax.random.uniform(k3, (feature_dim, n_classes), jnp.float32, -lim_lin, lim_lin)
    b_lin = jax.random.uniform(k4, (n_classes,), jnp.float32, -lim_lin, lim_lin)

    def ref_bf16(xin):   # matches the kernel's bf16-MXU / f32-accum numerics
        n = xin.shape[0]
        xb = xin.reshape(n, -1).astype(jnp.bfloat16)
        feat = jnp.maximum(
            jnp.dot(xb, w_enc.astype(jnp.bfloat16),
                    preferred_element_type=jnp.float32) + b_enc, 0.0)
        return jnp.dot(feat.astype(jnp.bfloat16), w_lin.astype(jnp.bfloat16),
                       preferred_element_type=jnp.float32) + b_lin

    def ref_f32(xin):    # the original full-precision module semantics
        n = xin.shape[0]
        feat = jnp.maximum(xin.reshape(n, -1) @ w_enc + b_enc, 0.0)
        return feat @ w_lin + b_lin

    out = jax.block_until_ready(lin_model_forward(x, w_enc, b_enc, w_lin, b_lin))
    assert out.shape == (N, n_classes)
    assert jnp.allclose(out, ref_bf16(x), atol=2e-3, rtol=2e-3)
    assert jnp.allclose(out, ref_f32(x), atol=5e-2, rtol=5e-2)

    # Secondary check: multi-tile batch grid + multi-step K reduction with a
    # non-multiple batch size (exercises padding, (i,k) index maps, pl.when).
    N2 = 200
    x2 = jax.random.normal(jax.random.PRNGKey(1), (N2, Cin, H, W), dtype=jnp.float32)
    out2 = jax.block_until_ready(
        lin_model_forward(x2, w_enc, b_enc, w_lin, b_lin, tile_n=128, tk=256))
    assert out2.shape == (N2, n_classes)
    assert jnp.allclose(out2, ref_bf16(x2), atol=2e-3, rtol=2e-3)
    assert jnp.allclose(out2, ref_f32(x2), atol=5e-2, rtol=5e-2)

    print("KERNEL_OK")
</pallas_src>

<mosaic_0001>
module attributes {stable_mosaic.version = 11 : i64} {
  func.func @linmodel_kernel(%arg0: i32, %arg1: i32, %arg2: memref<8x1024xbf16, #tpu.memory_space<vmem>>, %arg3: memref<1024x128xbf16, #tpu.memory_space<vmem>>, %arg4: memref<1x128xf32, #tpu.memory_space<vmem>>, %arg5: memref<128x128xbf16, #tpu.memory_space<vmem>>, %arg6: memref<1x128xf32, #tpu.memory_space<vmem>>, %arg7: memref<8x128xf32, #tpu.memory_space<vmem>>, %arg8: memref<8x128xf32, #tpu.memory_space<vmem>>) attributes {dimension_semantics = [#tpu.dimension_semantics<parallel>, #tpu.dimension_semantics<arbitrary>], iteration_bounds = array<i64: 1, 1>, scalar_prefetch = 0 : i64, scratch_operands = 1 : i64, tpu.core_type = #tpu.core_type<tc>, window_params = [{transform_indices = @transform_0, window_bounds = array<i64: 8, 1024>}, {transform_indices = @transform_1, window_bounds = array<i64: 1024, 128>}, {pipeline_mode = #tpu.pipeline_mode<synchronous>, transform_indices = @transform_2, window_bounds = array<i64: 1, 128>}, {pipeline_mode = #tpu.pipeline_mode<synchronous>, transform_indices = @transform_3, window_bounds = array<i64: 128, 128>}, {pipeline_mode = #tpu.pipeline_mode<synchronous>, transform_indices = @transform_4, window_bounds = array<i64: 1, 128>}, {transform_indices = @transform_5, window_bounds = array<i64: 8, 128>}]} {
    %c0_i32 = arith.constant 0 : i32
    %0 = arith.cmpi eq, %arg1, %c0_i32 : i32
    %1 = arith.extui %0 : i1 to i32
    %c0_i32_0 = arith.constant 0 : i32
    %2 = arith.cmpi ne, %1, %c0_i32_0 : i32
    scf.if %2 {
      %cst_10 = arith.constant 0.000000e+00 : f32
      %12 = vector.broadcast %cst_10 : f32 to vector<8x128xf32>
      %c0_11 = arith.constant 0 : index
      %c0_12 = arith.constant 0 : index
      %13 = vector.load %arg8[%c0_11, %c0_12] : memref<8x128xf32, #tpu.memory_space<vmem>>, vector<8x128xf32>
      tpu.vector_store %arg8[%c0_11, %c0_12], %12 {strides = array<i32>} : memref<8x128xf32, #tpu.memory_space<vmem>>, vector<8x128xf32>,
    } else {
    }
    %c0 = arith.constant 0 : index
    %c0_1 = arith.constant 0 : index
    %3 = vector.load %arg8[%c0, %c0_1] : memref<8x128xf32, #tpu.memory_space<vmem>>, vector<8x128xf32>
    %c0_2 = arith.constant 0 : index
    %c0_3 = arith.constant 0 : index
    %4 = vector.load %arg2[%c0_2, %c0_3] : memref<8x1024xbf16, #tpu.memory_space<vmem>>, vector<8x1024xbf16>
    %c0_4 = arith.constant 0 : index
    %c0_5 = arith.constant 0 : index
    %5 = vector.load %arg3[%c0_4, %c0_5] : memref<1024x128xbf16, #tpu.memory_space<vmem>>, vector<1024x128xbf16>
    %cst = arith.constant dense<0.000000e+00> : vector<8x128xf32>
    %6 = tpu.matmul %4, %5, %cst {dimension_numbers = #tpu.dot_dimension_numbers<[1], [0], [0], [1], [0, 0, 1, 1], [], []>} : vector<8x1024xbf16>, vector<1024x128xbf16>, vector<8x128xf32> -> vector<8x128xf32>
    %7 = arith.addf %3, %6 : vector<8x128xf32>
    %c0_6 = arith.constant 0 : index
    %c0_7 = arith.constant 0 : index
    %8 = vector.load %arg8[%c0_6, %c0_7] : memref<8x128xf32, #tpu.memory_space<vmem>>, vector<8x128xf32>
    tpu.vector_store %arg8[%c0_6, %c0_7], %7 {strides = array<i32>} : memref<8x128xf32, #tpu.memory_space<vmem>>, vector<8x128xf32>,
    %c0_i32_8 = arith.constant 0 : i32
    %9 = arith.cmpi eq, %arg1, %c0_i32_8 : i32
    %10 = arith.extui %9 : i1 to i32
    %c0_i32_9 = arith.constant 0 : i32
    %11 = arith.cmpi ne, %10, %c0_i32_9 : i32
    scf.if %11 {
      %c0_10 = arith.constant 0 : index
      %c0_11 = arith.constant 0 : index
      %12 = vector.load %arg8[%c0_10, %c0_11] : memref<8x128xf32, #tpu.memory_space<vmem>>, vector<8x128xf32>
      %c0_12 = arith.constant 0 : index
      %c0_13 = arith.constant 0 : index
      %13 = vector.load %arg4[%c0_12, %c0_13] : memref<1x128xf32, #tpu.memory_space<vmem>>, vector<1x128xf32>
      %14 = vector.broadcast %13 : vector<1x128xf32> to vector<8x128xf32>
      %15 = arith.addf %12, %14 : vector<8x128xf32>
      %cst_14 = arith.constant 0.000000e+00 : f32
      %16 = vector.broadcast %cst_14 : f32 to vector<8x128xf32>
      %17 = arith.maximumf %15, %16 : vector<8x128xf32>
      %18 = arith.truncf %17 : vector<8x128xf32> to vector<8x128xbf16>
      %c0_15 = arith.constant 0 : index
      %c0_16 = arith.constant 0 : index
      %19 = vector.load %arg5[%c0_15, %c0_16] : memref<128x128xbf16, #tpu.memory_space<vmem>>, vector<128x128xbf16>
      %cst_17 = arith.constant dense<0.000000e+00> : vector<8x128xf32>
      %20 = tpu.matmul %18, %19, %cst_17 {dimension_numbers = #tpu.dot_dimension_numbers<[1], [0], [0], [1], [0, 0, 1, 1], [], []>} : vector<8x128xbf16>, vector<128x128xbf16>, vector<8x128xf32> -> vector<8x128xf32>
      %c0_18 = arith.constant 0 : index
      %c0_19 = arith.constant 0 : index
      %21 = vector.load %arg6[%c0_18, %c0_19] : memref<1x128xf32, #tpu.memory_space<vmem>>, vector<1x128xf32>
      %22 = vector.broadcast %21 : vector<1x128xf32> to vector<8x128xf32>
      %23 = arith.addf %20, %22 : vector<8x128xf32>
      %c0_20 = arith.constant 0 : index
      %c0_21 = arith.constant 0 : index
      %24 = vector.load %arg7[%c0_20, %c0_21] : memref<8x128xf32, #tpu.memory_space<vmem>>, vector<8x128xf32>
      tpu.vector_store %arg7[%c0_20, %c0_21], %23 {strides = array<i32>} : memref<8x128xf32, #tpu.memory_space<vmem>>, vector<8x128xf32>,
    } else {
    }
    return
  }
  func.func @transform_0(%arg0: i32, %arg1: i32) -> (i32, i32) {
    %c0_i32 = arith.constant 0 : i32
    return %arg0, %arg1 : i32, i32
  }
  func.func @transform_1(%arg0: i32, %arg1: i32) -> (i32, i32) {
    %c0_i32 = arith.constant 0 : i32
    %c0_i32_0 = arith.constant 0 : i32
    return %arg1, %c0_i32 : i32, i32
  }
  func.func @transform_2(%arg0: i32, %arg1: i32) -> (i32, i32) {
    %c0_i32 = arith.constant 0 : i32
    %c0_i32_0 = arith.constant 0 : i32
    %c0_i32_1 = arith.constant 0 : i32
    return %c0_i32, %c0_i32_0 : i32, i32
  }
  func.func @transform_3(%arg0: i32, %arg1: i32) -> (i32, i32) {
    %c0_i32 = arith.constant 0 : i32
    %c0_i32_0 = arith.constant 0 : i32
    %c0_i32_1 = arith.constant 0 : i32
    return %c0_i32, %c0_i32_0 : i32, i32
  }
  func.func @transform_4(%arg0: i32, %arg1: i32) -> (i32, i32) {
    %c0_i32 = arith.constant 0 : i32
    %c0_i32_0 = arith.constant 0 : i32
    %c0_i32_1 = arith.constant 0 : i32
    return %c0_i32, %c0_i32_0 : i32, i32
  }
  func.func @transform_5(%arg0: i32, %arg1: i32) -> (i32, i32) {
    %c0_i32 = arith.constant 0 : i32
    %c0_i32_0 = arith.constant 0 : i32
    return %arg0, %c0_i32 : i32, i32
  }
}

</mosaic_0001>

<llo_original>
// kernel: _lin_model_forward.1
$region0: #{_lin_model_forward.1}
  #allocation0 [shape = 'u32[]', space=smem, size = 0x4, offset = 0x4, fixed_abs, tag = 'smem constant byte address 0x4 - core index']
  #allocation1 [shape = 'u32[144,128]{1,0:T(1,128)}', space=vmem, size = 0x12000, scoped, tag = 'internal scratch']
  #allocation2 [shape = 'f32[8,128]{1,0:T(8,128)}', space=vmem, size = 0x1000, scoped, tag = 'scratch operand']
  %s0 = inlined_call_operand.vmem [shape: bf16[8,1024], index: 0, kind: input, shape index: {}]
  %s1 = inlined_call_operand.vmem [shape: bf16[1024,128], index: 1, kind: input, shape index: {}]
  %s2 = inlined_call_operand.vmem [shape: f32[1,128], index: 2, kind: input, shape index: {}]
  %s3 = inlined_call_operand.vmem [shape: bf16[128,128], index: 3, kind: input, shape index: {}]
  %s4 = inlined_call_operand.vmem [shape: f32[1,128], index: 4, kind: input, shape index: {}]
  %s5 = inlined_call_operand.vmem [shape: f32[8,128], index: 5, kind: output, shape index: {}]
  %s6 = sld [smem:[#allocation0]]
  $region38: #{_lin_model_forward.1} parent=0
    _
  %s8 = ssub.s32 1, %s6
  %s9 = scalar_select 0, %s8, %s6
  // Predicated region
  $region2: #{_lin_model_forward.1} parent=0 // pred_check
    _
  $region3: #{_lin_model_forward.1} parent=0 // pred_check_branch
    %11 = sbr.rel (0) target = $region5
  $region4: #{_lin_model_forward.1} parent=0 // pred_region
    _
  $region5: #{_lin_model_forward.1} parent=0 // pred_fallthru
    _
  // Predicated region
  $region6: #{_lin_model_forward.1} parent=0 // pred_check
    _
  $region7: #{_lin_model_forward.1} parent=0 // pred_check_branch
    %13 = sbr.rel (0) target = $region9
  $region8: #{_lin_model_forward.1} parent=0 // pred_region
    _
  $region9: #{_lin_model_forward.1} parent=0 // pred_fallthru
    _
  // Predicated region
  $region10: #{_lin_model_forward.1} parent=0 // pred_check
    _
  $region11: #{_lin_model_forward.1} parent=0 // pred_check_branch
    %15 = sbr.rel (0) target = $region13
  $region12: #{_lin_model_forward.1} parent=0 // pred_region
    _
  $region13: #{_lin_model_forward.1} parent=0 // pred_fallthru
    _
  // Predicated region
  $region14: #{_lin_model_forward.1} parent=0 // pred_check
    _
  $region15: #{_lin_model_forward.1} parent=0 // pred_check_branch
    %17 = sbr.rel (0) target = $region17
  $region16: #{_lin_model_forward.1} parent=0 // pred_region
    _
  $region17: #{_lin_model_forward.1} parent=0 // pred_fallthru
    _
  // Predicated region
  $region18: #{_lin_model_forward.1} parent=0 // pred_check
    _
  $region19: #{_lin_model_forward.1} parent=0 // pred_check_branch
    %19 = sbr.rel (0) target = $region21
  $region20: #{_lin_model_forward.1} parent=0 // pred_region
    _
  $region21: #{_lin_model_forward.1} parent=0 // pred_fallthru
    _
  %p21 = scmp.eq.s32.totalorder 0, 0
  // Predicated region
  $region22: #{_lin_model_forward.1} parent=0 // pred_check
    %p22 = pneg %p21
  $region23: #{_lin_model_forward.1} parent=0 // pred_check_branch
    %24 = sbr.rel (%p22) target = $region25
  $region24: #{_lin_model_forward.1} parent=0 // pred_region
    %25 = vst [vmem:[#allocation2] sm:$0xff] 0.0
  $region25: #{_lin_model_forward.1} parent=0 // pred_fallthru
    _
  %v26 = vld [vmem:[#allocation2] sm:$0xff]
  %v27 = vld [vmem:[%s0] sm:$0xff]
  %v28 = vld [vmem:[%s0 + $0x8] sm:$0xff]
  %v29 = vld [vmem:[%s0 + $0x10] sm:$0xff]
  %v30 = vld [vmem:[%s0 + $0x18] sm:$0xff]
  %v31 = vld [vmem:[%s1] sm:$0xf]
  %v32 = vld [vmem:[%s1 + $0x4] sm:$0xf]
  %v33 = vld [vmem:[%s1 + $0x8] sm:$0xf]
  %v34 = vld [vmem:[%s1 + $0xc] sm:$0xf]
  %v35 = vld [vmem:[%s1 + $0x10] sm:$0xf]
  %v36 = vld [vmem:[%s1 + $0x14] sm:$0xf]
  %v37 = vld [vmem:[%s1 + $0x18] sm:$0xf]
  %v38 = vld [vmem:[%s1 + $0x1c] sm:$0xf]
  %v39 = vld [vmem:[%s1 + $0x20] sm:$0xf]
  %v40 = vld [vmem:[%s1 + $0x24] sm:$0xf]
  %v41 = vld [vmem:[%s1 + $0x28] sm:$0xf]
  %v42 = vld [vmem:[%s1 + $0x2c] sm:$0xf]
  %v43 = vld [vmem:[%s1 + $0x30] sm:$0xf]
  %v44 = vld [vmem:[%s1 + $0x34] sm:$0xf]
  %v45 = vld [vmem:[%s1 + $0x38] sm:$0xf]
  %v46 = vld [vmem:[%s1 + $0x3c] sm:$0xf]
  %v47 = vld [vmem:[%s1 + $0x40] sm:$0xf]
  %v48 = vld [vmem:[%s1 + $0x44] sm:$0xf]
  %v49 = vld [vmem:[%s1 + $0x48] sm:$0xf]
  %v50 = vld [vmem:[%s1 + $0x4c] sm:$0xf]
  %v51 = vld [vmem:[%s1 + $0x50] sm:$0xf]
  %v52 = vld [vmem:[%s1 + $0x54] sm:$0xf]
  %v53 = vld [vmem:[%s1 + $0x58] sm:$0xf]
  %v54 = vld [vmem:[%s1 + $0x5c] sm:$0xf]
  %v55 = vld [vmem:[%s1 + $0x60] sm:$0xf]
  %v56 = vld [vmem:[%s1 + $0x64] sm:$0xf]
  %v57 = vld [vmem:[%s1 + $0x68] sm:$0xf]
  %v58 = vld [vmem:[%s1 + $0x6c] sm:$0xf]
  %v59 = vld [vmem:[%s1 + $0x70] sm:$0xf]
  %v60 = vld [vmem:[%s1 + $0x74] sm:$0xf]
  %v61 = vld [vmem:[%s1 + $0x78] sm:$0xf]
  %v62 = vld [vmem:[%s1 + $0x7c] sm:$0xf]
  %v63 = vld [vmem:[%s1 + $0x80] sm:$0xf]
  %v64 = vld [vmem:[%s1 + $0x84] sm:$0xf]
  %v65 = vld [vmem:[%s1 + $0x88] sm:$0xf]
  %v66 = vld [vmem:[%s1 + $0x8c] sm:$0xf]
  %v67 = vld [vmem:[%s1 + $0x90] sm:$0xf]
  %v68 = vld [vmem:[%s1 + $0x94] sm:$0xf]
  %v69 = vld [vmem:[%s1 + $0x98] sm:$0xf]
  %v70 = vld [vmem:[%s1 + $0x9c] sm:$0xf]
  %v71 = vld [vmem:[%s1 + $0xa0] sm:$0xf]
  %v72 = vld [vmem:[%s1 + $0xa4] sm:$0xf]
  %v73 = vld [vmem:[%s1 + $0xa8] sm:$0xf]
  %v74 = vld [vmem:[%s1 + $0xac] sm:$0xf]
  %v75 = vld [vmem:[%s1 + $0xb0] sm:$0xf]
  %v76 = vld [vmem:[%s1 + $0xb4] sm:$0xf]
  %v77 = vld [vmem:[%s1 + $0xb8] sm:$0xf]
  %v78 = vld [vmem:[%s1 + $0xbc] sm:$0xf]
  %v79 = vld [vmem:[%s1 + $0xc0] sm:$0xf]
  %v80 = vld [vmem:[%s1 + $0xc4] sm:$0xf]
  %v81 = vld [vmem:[%s1 + $0xc8] sm:$0xf]
  %v82 = vld [vmem:[%s1 + $0xcc] sm:$0xf]
  %v83 = vld [vmem:[%s1 + $0xd0] sm:$0xf]
  %v84 = vld [vmem:[%s1 + $0xd4] sm:$0xf]
  %v85 = vld [vmem:[%s1 + $0xd8] sm:$0xf]
  %v86 = vld [vmem:[%s1 + $0xdc] sm:$0xf]
  %v87 = vld [vmem:[%s1 + $0xe0] sm:$0xf]
  %v88 = vld [vmem:[%s1 + $0xe4] sm:$0xf]
  %v89 = vld [vmem:[%s1 + $0xe8] sm:$0xf]
  %v90 = vld [vmem:[%s1 + $0xec] sm:$0xf]
  %v91 = vld [vmem:[%s1 + $0xf0] sm:$0xf]
  %v92 = vld [vmem:[%s1 + $0xf4] sm:$0xf]
  %v93 = vld [vmem:[%s1 + $0xf8] sm:$0xf]
  %v94 = vld [vmem:[%s1 + $0xfc] sm:$0xf]
  %v95 = vld [vmem:[%s1 + $0x100] sm:$0xf]
  %v96 = vld [vmem:[%s1 + $0x104] sm:$0xf]
  %v97 = vld [vmem:[%s1 + $0x108] sm:$0xf]
  %v98 = vld [vmem:[%s1 + $0x10c] sm:$0xf]
  %v99 = vld [vmem:[%s1 + $0x110] sm:$0xf]
  %v100 = vld [vmem:[%s1 + $0x114] sm:$0xf]
  %v101 = vld [vmem:[%s1 + $0x118] sm:$0xf]
  %v102 = vld [vmem:[%s1 + $0x11c] sm:$0xf]
  %v103 = vld [vmem:[%s1 + $0x120] sm:$0xf]
  %v104 = vld [vmem:[%s1 + $0x124] sm:$0xf]
  %v105 = vld [vmem:[%s1 + $0x128] sm:$0xf]
  %v106 = vld [vmem:[%s1 + $0x12c] sm:$0xf]
  %v107 = vld [vmem:[%s1 + $0x130] sm:$0xf]
  %v108 = vld [vmem:[%s1 + $0x134] sm:$0xf]
  %v109 = vld [vmem:[%s1 + $0x138] sm:$0xf]
  %v110 = vld [vmem:[%s1 + $0x13c] sm:$0xf]
  %v111 = vld [vmem:[%s1 + $0x140] sm:$0xf]
  %v112 = vld [vmem:[%s1 + $0x144] sm:$0xf]
  %v113 = vld [vmem:[%s1 + $0x148] sm:$0xf]
  %v114 = vld [vmem:[%s1 + $0x14c] sm:$0xf]
  %v115 = vld [vmem:[%s1 + $0x150] sm:$0xf]
  %v116 = vld [vmem:[%s1 + $0x154] sm:$0xf]
  %v117 = vld [vmem:[%s1 + $0x158] sm:$0xf]
  %v118 = vld [vmem:[%s1 + $0x15c] sm:$0xf]
  %v119 = vld [vmem:[%s1 + $0x160] sm:$0xf]
  %v120 = vld [vmem:[%s1 + $0x164] sm:$0xf]
  %v121 = vld [vmem:[%s1 + $0x168] sm:$0xf]
  %v122 = vld [vmem:[%s1 + $0x16c] sm:$0xf]
  %v123 = vld [vmem:[%s1 + $0x170] sm:$0xf]
  %v124 = vld [vmem:[%s1 + $0x174] sm:$0xf]
  %v125 = vld [vmem:[%s1 + $0x178] sm:$0xf]
  %v126 = vld [vmem:[%s1 + $0x17c] sm:$0xf]
  %v127 = vld [vmem:[%s1 + $0x180] sm:$0xf]
  %v128 = vld [vmem:[%s1 + $0x184] sm:$0xf]
  %v129 = vld [vmem:[%s1 + $0x188] sm:$0xf]
  %v130 = vld [vmem:[%s1 + $0x18c] sm:$0xf]
  %v131 = vld [vmem:[%s1 + $0x190] sm:$0xf]
  %v132 = vld [vmem:[%s1 + $0x194] sm:$0xf]
  %v133 = vld [vmem:[%s1 + $0x198] sm:$0xf]
  %v134 = vld [vmem:[%s1 + $0x19c] sm:$0xf]
  %v135 = vld [vmem:[%s1 + $0x1a0] sm:$0xf]
  %v136 = vld [vmem:[%s1 + $0x1a4] sm:$0xf]
  %v137 = vld [vmem:[%s1 + $0x1a8] sm:$0xf]
  %v138 = vld [vmem:[%s1 + $0x1ac] sm:$0xf]
  %v139 = vld [vmem:[%s1 + $0x1b0] sm:$0xf]
  %v140 = vld [vmem:[%s1 + $0x1b4] sm:$0xf]
  %v141 = vld [vmem:[%s1 + $0x1b8] sm:$0xf]
  %v142 = vld [vmem:[%s1 + $0x1bc] sm:$0xf]
  %v143 = vld [vmem:[%s1 + $0x1c0] sm:$0xf]
  %v144 = vld [vmem:[%s1 + $0x1c4] sm:$0xf]
  %v145 = vld [vmem:[%s1 + $0x1c8] sm:$0xf]
  %v146 = vld [vmem:[%s1 + $0x1cc] sm:$0xf]
  %v147 = vld [vmem:[%s1 + $0x1d0] sm:$0xf]
  %v148 = vld [vmem:[%s1 + $0x1d4] sm:$0xf]
  %v149 = vld [vmem:[%s1 + $0x1d8] sm:$0xf]
  %v150 = vld [vmem:[%s1 + $0x1dc] sm:$0xf]
  %v151 = vld [vmem:[%s1 + $0x1e0] sm:$0xf]
  %v152 = vld [vmem:[%s1 + $0x1e4] sm:$0xf]
  %v153 = vld [vmem:[%s1 + $0x1e8] sm:$0xf]
  %v154 = vld [vmem:[%s1 + $0x1ec] sm:$0xf]
  %v155 = vld [vmem:[%s1 + $0x1f0] sm:$0xf]
  %v156 = vld [vmem:[%s1 + $0x1f4] sm:$0xf]
  %v157 = vld [vmem:[%s1 + $0x1f8] sm:$0xf]
  %v158 = vld [vmem:[%s1 + $0x1fc] sm:$0xf]
  %v163 = vunpack.c.l.b16 %v27
  %v164 = vunpack.c.h.b16 %v27
  %v165 = vunpack.c.l.b16 %v28
  %v166 = vunpack.c.h.b16 %v28
  %v167 = vunpack.c.l.b16 %v29
  %v168 = vunpack.c.h.b16 %v29
  %v169 = vunpack.c.l.b16 %v30
  %v170 = vunpack.c.h.b16 %v30
  %v171 = vpack.c.b16 %v163, %v163
  %v172 = vpack.c.b16 %v164, %v164
  %v173 = vpack.c.b16 %v165, %v165
  %v174 = vpack.c.b16 %v166, %v166
  %v175 = vpack.c.b16 %v167, %v167
  %v176 = vpack.c.b16 %v168, %v168
  %v177 = vpack.c.b16 %v169, %v169
  %v178 = vpack.c.b16 %v170, %v170
  %v315 = vunpack.c.l.b16 %v31
  %v316 = vunpack.c.l.b16 %v32
  %v317 = vunpack.c.l.b16 %v33
  %v318 = vunpack.c.l.b16 %v34
  %v319 = vunpack.c.l.b16 %v35
  %v320 = vunpack.c.l.b16 %v36
  %v321 = vunpack.c.l.b16 %v37
  %v322 = vunpack.c.l.b16 %v38
  %v323 = vunpack.c.l.b16 %v39
  %v324 = vunpack.c.l.b16 %v40
  %v325 = vunpack.c.l.b16 %v41
  %v326 = vunpack.c.l.b16 %v42
  %v327 = vunpack.c.l.b16 %v43
  %v328 = vunpack.c.l.b16 %v44
  %v329 = vunpack.c.l.b16 %v45
  %v330 = vunpack.c.l.b16 %v46
  %v331 = vunpack.c.l.b16 %v47
  %v332 = vunpack.c.l.b16 %v48
  %v333 = vunpack.c.l.b16 %v49
  %v334 = vunpack.c.l.b16 %v50
  %v335 = vunpack.c.l.b16 %v51
  %v336 = vunpack.c.l.b16 %v52
  %v337 = vunpack.c.l.b16 %v53
  %v338 = vunpack.c.l.b16 %v54
  %v339 = vunpack.c.l.b16 %v55
  %v340 = vunpack.c.l.b16 %v56
  %v341 = vunpack.c.l.b16 %v57
  %v342 = vunpack.c.l.b16 %v58
  %v343 = vunpack.c.l.b16 %v59
  %v344 = vunpack.c.l.b16 %v60
  %v345 = vunpack.c.l.b16 %v61
  %v346 = vunpack.c.l.b16 %v62
  %v347 = vunpack.c.l.b16 %v63
  %v348 = vunpack.c.l.b16 %v64
  %v349 = vunpack.c.l.b16 %v65
  %v350 = vunpack.c.l.b16 %v66
  %v351 = vunpack.c.l.b16 %v67
  %v352 = vunpack.c.l.b16 %v68
  %v353 = vunpack.c.l.b16 %v69
  %v354 = vunpack.c.l.b16 %v70
  %v355 = vunpack.c.l.b16 %v71
  %v356 = vunpack.c.l.b16 %v72
  %v357 = vunpack.c.l.b16 %v73
  %v358 = vunpack.c.l.b16 %v74
  %v359 = vunpack.c.l.b16 %v75
  %v360 = vunpack.c.l.b16 %v76
  %v361 = vunpack.c.l.b16 %v77
  %v362 = vunpack.c.l.b16 %v78
  %v363 = vunpack.c.l.b16 %v79
  %v364 = vunpack.c.l.b16 %v80
  %v365 = vunpack.c.l.b16 %v81
  %v366 = vunpack.c.l.b16 %v82
  %v367 = vunpack.c.l.b16 %v83
  %v368 = vunpack.c.l.b16 %v84
  %v369 = vunpack.c.l.b16 %v85
  %v370 = vunpack.c.l.b16 %v86
  %v371 = vunpack.c.l.b16 %v87
  %v372 = vunpack.c.l.b16 %v88
  %v373 = vunpack.c.l.b16 %v89
  %v374 = vunpack.c.l.b16 %v90
  %v375 = vunpack.c.l.b16 %v91
  %v376 = vunpack.c.l.b16 %v92
  %v377 = vunpack.c.l.b16 %v93
  %v378 = vunpack.c.l.b16 %v94
  %v379 = vunpack.c.l.b16 %v95
  %v380 = vunpack.c.l.b16 %v96
  %v381 = vunpack.c.l.b16 %v97
  %v382 = vunpack.c.l.b16 %v98
  %v383 = vunpack.c.l.b16 %v99
  %v384 = vunpack.c.l.b16 %v100
  %v385 = vunpack.c.l.b16 %v101
  %v386 = vunpack.c.l.b16 %v102
  %v387 = vunpack.c.l.b16 %v103
  %v388 = vunpack.c.l.b16 %v104
  %v389 = vunpack.c.l.b16 %v105
  %v390 = vunpack.c.l.b16 %v106
  %v391 = vunpack.c.l.b16 %v107
  %v392 = vunpack.c.l.b16 %v108
  %v393 = vunpack.c.l.b16 %v109
  %v394 = vunpack.c.l.b16 %v110
  %v395 = vunpack.c.l.b16 %v111
  %v396 = vunpack.c.l.b16 %v112
  %v397 = vunpack.c.l.b16 %v113
  %v398 = vunpack.c.l.b16 %v114
  %v399 = vunpack.c.l.b16 %v115
  %v400 = vunpack.c.l.b16 %v116
  %v401 = vunpack.c.l.b16 %v117
  %v402 = vunpack.c.l.b16 %v118
  %v403 = vunpack.c.l.b16 %v119
  %v404 = vunpack.c.l.b16 %v120
  %v405 = vunpack.c.l.b16 %v121
  %v406 = vunpack.c.l.b16 %v122
  %v407 = vunpack.c.l.b16 %v123
  %v408 = vunpack.c.l.b16 %v124
  %v409 = vunpack.c.l.b16 %v125
  %v410 = vunpack.c.l.b16 %v126
  %v411 = vunpack.c.l.b16 %v127
  %v412 = vunpack.c.l.b16 %v128
  %v413 = vunpack.c.l.b16 %v129
  %v414 = vunpack.c.l.b16 %v130
  %v415 = vunpack.c.l.b16 %v131
  %v416 = vunpack.c.l.b16 %v132
  %v417 = vunpack.c.l.b16 %v133
  %v418 = vunpack.c.l.b16 %v134
  %v419 = vunpack.c.l.b16 %v135
  %v420 = vunpack.c.l.b16 %v136
  %v421 = vunpack.c.l.b16 %v137
  %v422 = vunpack.c.l.b16 %v138
  %v423 = vunpack.c.l.b16 %v139
  %v424 = vunpack.c.l.b16 %v140
  %v425 = vunpack.c.l.b16 %v141
  %v426 = vunpack.c.l.b16 %v142
  %v427 = vunpack.c.l.b16 %v143
  %v428 = vunpack.c.l.b16 %v144
  %v429 = vunpack.c.l.b16 %v145
  %v430 = vunpack.c.l.b16 %v146
  %v431 = vunpack.c.l.b16 %v147
  %v432 = vunpack.c.l.b16 %v148
  %v433 = vunpack.c.l.b16 %v149
  %v434 = vunpack.c.l.b16 %v150
  %v435 = vunpack.c.l.b16 %v151
  %v436 = vunpack.c.l.b16 %v152
  %v437 = vunpack.c.l.b16 %v153
  %v438 = vunpack.c.l.b16 %v154
  %v439 = vunpack.c.l.b16 %v155
  %v440 = vunpack.c.l.b16 %v156
  %v441 = vunpack.c.l.b16 %v157
  %v442 = vunpack.c.l.b16 %v158
  %v443 = vpack.c.b16 %v316, %v315
  %v444 = vpack.c.b16 %v318, %v317
  %v445 = vpack.c.b16 %v320, %v319
  %v446 = vpack.c.b16 %v322, %v321
  %v447 = vpack.c.b16 %v324, %v323
  %v448 = vpack.c.b16 %v326, %v325
  %v449 = vpack.c.b16 %v328, %v327
  %v450 = vpack.c.b16 %v330, %v329
  %v451 = vpack.c.b16 %v332, %v331
  %v452 = vpack.c.b16 %v334, %v333
  %v453 = vpack.c.b16 %v336, %v335
  %v454 = vpack.c.b16 %v338, %v337
  %v455 = vpack.c.b16 %v340, %v339
  %v456 = vpack.c.b16 %v342, %v341
  %v457 = vpack.c.b16 %v344, %v343
  %v458 = vpack.c.b16 %v346, %v345
  %v459 = vpack.c.b16 %v348, %v347
  %v460 = vpack.c.b16 %v350, %v349
  %v461 = vpack.c.b16 %v352, %v351
  %v462 = vpack.c.b16 %v354, %v353
  %v463 = vpack.c.b16 %v356, %v355
  %v464 = vpack.c.b16 %v358, %v357
  %v465 = vpack.c.b16 %v360, %v359
  %v466 = vpack.c.b16 %v362, %v361
  %v467 = vpack.c.b16 %v364, %v363
  %v468 = vpack.c.b16 %v366, %v365
  %v469 = vpack.c.b16 %v368, %v367
  %v470 = vpack.c.b16 %v370, %v369
  %v471 = vpack.c.b16 %v372, %v371
  %v472 = vpack.c.b16 %v374, %v373
  %v473 = vpack.c.b16 %v376, %v375
  %v474 = vpack.c.b16 %v378, %v377
  %v475 = vpack.c.b16 %v380, %v379
  %v476 = vpack.c.b16 %v382, %v381
  %v477 = vpack.c.b16 %v384, %v383
  %v478 = vpack.c.b16 %v386, %v385
  %v479 = vpack.c.b16 %v388, %v387
  %v480 = vpack.c.b16 %v390, %v389
  %v481 = vpack.c.b16 %v392, %v391
  %v482 = vpack.c.b16 %v394, %v393
  %v483 = vpack.c.b16 %v396, %v395
  %v484 = vpack.c.b16 %v398, %v397
  %v485 = vpack.c.b16 %v400, %v399
  %v486 = vpack.c.b16 %v402, %v401
  %v487 = vpack.c.b16 %v404, %v403
  %v488 = vpack.c.b16 %v406, %v405
  %v489 = vpack.c.b16 %v408, %v407
  %v490 = vpack.c.b16 %v410, %v409
  %v491 = vpack.c.b16 %v412, %v411
  %v492 = vpack.c.b16 %v414, %v413
  %v493 = vpack.c.b16 %v416, %v415
  %v494 = vpack.c.b16 %v418, %v417
  %v495 = vpack.c.b16 %v420, %v419
  %v496 = vpack.c.b16 %v422, %v421
  %v497 = vpack.c.b16 %v424, %v423
  %v498 = vpack.c.b16 %v426, %v425
  %v499 = vpack.c.b16 %v428, %v427
  %v500 = vpack.c.b16 %v430, %v429
  %v501 = vpack.c.b16 %v432, %v431
  %v502 = vpack.c.b16 %v434, %v433
  %v503 = vpack.c.b16 %v436, %v435
  %v504 = vpack.c.b16 %v438, %v437
  %v505 = vpack.c.b16 %v440, %v439
  %v506 = vpack.c.b16 %v442, %v441
  %571 = vmatprep.subr.bf16.mxu0 0
  %572 = vmatpush1.bf16.msra.mxu0 %v443
  %573 = vmatprep.subr.bf16.mxu0 0
  %574 = vmatpush1.bf16.msra.mxu0 %v444
  %575 = vmatprep.subr.bf16.mxu0 0
  %576 = vmatpush1.bf16.msra.mxu0 %v445
  %577 = vmatprep.subr.bf16.mxu0 0
  %578 = vmatpush1.bf16.msra.mxu0 %v446
  %579 = vmatprep.subr.bf16.mxu0 0
  %580 = vmatpush1.bf16.msra.mxu0 %v447
  %581 = vmatprep.subr.bf16.mxu0 0
  %582 = vmatpush1.bf16.msra.mxu0 %v448
  %583 = vmatprep.subr.bf16.mxu0 0
  %584 = vmatpush1.bf16.msra.mxu0 %v449
  %585 = vmatprep.subr.bf16.mxu0 0
  %586 = vmatpush1.bf16.msra.mxu0 %v450
  %587 = vmatprep.subr.bf16.mxu0 0
  %588 = vmatpush1.bf16.msra.mxu0 %v451
  %589 = vmatprep.subr.bf16.mxu0 0
  %590 = vmatpush1.bf16.msra.mxu0 %v452
  %591 = vmatprep.subr.bf16.mxu0 0
  %592 = vmatpush1.bf16.msra.mxu0 %v453
  %593 = vmatprep.subr.bf16.mxu0 0
  %594 = vmatpush1.bf16.msra.mxu0 %v454
  %595 = vmatprep.subr.bf16.mxu0 0
  %596 = vmatpush1.bf16.msra.mxu0 %v455
  %597 = vmatprep.subr.bf16.mxu0 0
  %598 = vmatpush1.bf16.msra.mxu0 %v456
  %599 = vmatprep.subr.bf16.mxu0 0
  %600 = vmatpush1.bf16.msra.mxu0 %v457
  %601 = vmatprep.subr.bf16.mxu0 0
  %602 = vmatpush1.bf16.msra.mxu0 %v458
  %603 = vmatprep.mubr.bf16.mxu0 %v172
  %604 = vmatmul.mubr.bf16.gmra.mrb[0].mxu0 %v171
  %v605 = vpop.f32.mrb[0].mxu0
  %v606 = vadd.f32 0.0, %v605
  %v607 = vpop.f32.mrb[0].mxu0
  %v608 = vpop.f32.mrb[0].mxu0
  %v609 = vpop.f32.mrb[0].mxu0
  %610 = vdwg.mxu0
  %611 = vmatprep.subr.bf16.mxu0 0
  %612 = vmatpush1.bf16.msra.mxu0 %v459
  %613 = vmatprep.subr.bf16.mxu0 0
  %614 = vmatpush1.bf16.msra.mxu0 %v460
  %615 = vmatprep.subr.bf16.mxu0 0
  %616 = vmatpush1.bf16.msra.mxu0 %v461
  %617 = vmatprep.subr.bf16.mxu0 0
  %618 = vmatpush1.bf16.msra.mxu0 %v462
  %619 = vmatprep.subr.bf16.mxu0 0
  %620 = vmatpush1.bf16.msra.mxu0 %v463
  %621 = vmatprep.subr.bf16.mxu0 0
  %622 = vmatpush1.bf16.msra.mxu0 %v464
  %623 = vmatprep.subr.bf16.mxu0 0
  %624 = vmatpush1.bf16.msra.mxu0 %v465
  %625 = vmatprep.subr.bf16.mxu0 0
  %626 = vmatpush1.bf16.msra.mxu0 %v466
  %627 = vmatprep.subr.bf16.mxu0 0
  %628 = vmatpush1.bf16.msra.mxu0 %v467
  %629 = vmatprep.subr.bf16.mxu0 0
  %630 = vmatpush1.bf16.msra.mxu0 %v468
  %631 = vmatprep.subr.bf16.mxu0 0
  %632 = vmatpush1.bf16.msra.mxu0 %v469
  %633 = vmatprep.subr.bf16.mxu0 0
  %634 = vmatpush1.bf16.msra.mxu0 %v470
  %635 = vmatprep.subr.bf16.mxu0 0
  %636 = vmatpush1.bf16.msra.mxu0 %v471
  %637 = vmatprep.subr.bf16.mxu0 0
  %638 = vmatpush1.bf16.msra.mxu0 %v472
  %639 = vmatprep.subr.bf16.mxu0 0
  %640 = vmatpush1.bf16.msra.mxu0 %v473
  %641 = vmatprep.subr.bf16.mxu0 0
  %642 = vmatpush1.bf16.msra.mxu0 %v474
  %643 = vmatprep.mubr.bf16.mxu0 %v174
  %644 = vmatmul.mubr.bf16.gmra.mrb[0].mxu0 %v173
  %v645 = vpop.f32.mrb[0].mxu0
  %v646 = vadd.f32 %v606, %v645
  %v647 = vpop.f32.mrb[0].mxu0
  %v648 = vpop.f32.mrb[0].mxu0
  %v649 = vpop.f32.mrb[0].mxu0
  %650 = vdwg.mxu0
  %651 = vmatprep.subr.bf16.mxu0 0
  %652 = vmatpush1.bf16.msra.mxu0 %v475
  %653 = vmatprep.subr.bf16.mxu0 0
  %654 = vmatpush1.bf16.msra.mxu0 %v476
  %655 = vmatprep.subr.bf16.mxu0 0
  %656 = vmatpush1.bf16.msra.mxu0 %v477
  %657 = vmatprep.subr.bf16.mxu0 0
  %658 = vmatpush1.bf16.msra.mxu0 %v478
  %659 = vmatprep.subr.bf16.mxu0 0
  %660 = vmatpush1.bf16.msra.mxu0 %v479
  %661 = vmatprep.subr.bf16.mxu0 0
  %662 = vmatpush1.bf16.msra.mxu0 %v480
  %663 = vmatprep.subr.bf16.mxu0 0
  %664 = vmatpush1.bf16.msra.mxu0 %v481
  %665 = vmatprep.subr.bf16.mxu0 0
  %666 = vmatpush1.bf16.msra.mxu0 %v482
  %667 = vmatprep.subr.bf16.mxu0 0
  %668 = vmatpush1.bf16.msra.mxu0 %v483
  %669 = vmatprep.subr.bf16.mxu0 0
  %670 = vmatpush1.bf16.msra.mxu0 %v484
  %671 = vmatprep.subr.bf16.mxu0 0
  %672 = vmatpush1.bf16.msra.mxu0 %v485
  %673 = vmatprep.subr.bf16.mxu0 0
  %674 = vmatpush1.bf16.msra.mxu0 %v486
  %675 = vmatprep.subr.bf16.mxu0 0
  %676 = vmatpush1.bf16.msra.mxu0 %v487
  %677 = vmatprep.subr.bf16.mxu0 0
  %678 = vmatpush1.bf16.msra.mxu0 %v488
  %679 = vmatprep.subr.bf16.mxu0 0
  %680 = vmatpush1.bf16.msra.mxu0 %v489
  %681 = vmatprep.subr.bf16.mxu0 0
  %682 = vmatpush1.bf16.msra.mxu0 %v490
  %683 = vmatprep.mubr.bf16.mxu0 %v176
  %684 = vmatmul.mubr.bf16.gmra.mrb[0].mxu0 %v175
  %v685 = vpop.f32.mrb[0].mxu0
  %v686 = vadd.f32 %v646, %v685
  %v687 = vpop.f32.mrb[0].mxu0
  %v688 = vpop.f32.mrb[0].mxu0
  %v689 = vpop.f32.mrb[0].mxu0
  %690 = vdwg.mxu0
  %691 = vmatprep.subr.bf16.mxu0 0
  %692 = vmatpush1.bf16.msra.mxu0 %v491
  %693 = vmatprep.subr.bf16.mxu0 0
  %694 = vmatpush1.bf16.msra.mxu0 %v492
  %695 = vmatprep.subr.bf16.mxu0 0
  %696 = vmatpush1.bf16.msra.mxu0 %v493
  %697 = vmatprep.subr.bf16.mxu0 0
  %698 = vmatpush1.bf16.msra.mxu0 %v494
  %699 = vmatprep.subr.bf16.mxu0 0
  %700 = vmatpush1.bf16.msra.mxu0 %v495
  %701 = vmatprep.subr.bf16.mxu0 0
  %702 = vmatpush1.bf16.msra.mxu0 %v496
  %703 = vmatprep.subr.bf16.mxu0 0
  %704 = vmatpush1.bf16.msra.mxu0 %v497
  %705 = vmatprep.subr.bf16.mxu0 0
  %706 = vmatpush1.bf16.msra.mxu0 %v498
  %707 = vmatprep.subr.bf16.mxu0 0
  %708 = vmatpush1.bf16.msra.mxu0 %v499
  %709 = vmatprep.subr.bf16.mxu0 0
  %710 = vmatpush1.bf16.msra.mxu0 %v500
  %711 = vmatprep.subr.bf16.mxu0 0
  %712 = vmatpush1.bf16.msra.mxu0 %v501
  %713 = vmatprep.subr.bf16.mxu0 0
  %714 = vmatpush1.bf16.msra.mxu0 %v502
  %715 = vmatprep.subr.bf16.mxu0 0
  %716 = vmatpush1.bf16.msra.mxu0 %v503
  %717 = vmatprep.subr.bf16.mxu0 0
  %718 = vmatpush1.bf16.msra.mxu0 %v504
  %719 = vmatprep.subr.bf16.mxu0 0
  %720 = vmatpush1.bf16.msra.mxu0 %v505
  %721 = vmatprep.subr.bf16.mxu0 0
  %722 = vmatpush1.bf16.msra.mxu0 %v506
  %723 = vmatprep.mubr.bf16.mxu0 %v178
  %724 = vmatmul.mubr.bf16.gmra.mrb[0].mxu0 %v177
  %v725 = vpop.f32.mrb[0].mxu0
  %v726 = vadd.f32 %v686, %v725
  %v727 = vpop.f32.mrb[0].mxu0
  %v728 = vpop.f32.mrb[0].mxu0
  %v729 = vpop.f32.mrb[0].mxu0
  %730 = vdwg.mxu0
  %v731 = vadd.f32 %v26, %v726
  %732 = vst [vmem:[#allocation2] sm:$0xff] %v731
  // Predicated region
  $region26: #{_lin_model_forward.1} parent=0 // pred_check
    %p733 = pneg %p21
  $region27: #{_lin_model_forward.1} parent=0 // pred_check_branch
    %735 = sbr.rel (%p733) target = $region29
  $region28: #{_lin_model_forward.1} parent=0 // pred_region
    %v736 = vld [vmem:[#allocation2] sm:$0xff]
    %v737 = vld [vmem:[%s2] sm:$0x1]
    %v739 = vlaneseq
    %v740 = vshrl.u32 %v739, 7
    %v741 = vsub.s32 0, %v740
    %v742 = vrot.slane %v737, %v741
    %v744 = vadd.f32 %v736, %v742
    %v745 = vmax.f32 %v744, 0.0
    %v746 = vpack.c.bf16 %v745, %v745
    %v747 = vld [vmem:[%s3] sm:$0xf]
    %v748 = vld [vmem:[%s3 + $0x4] sm:$0xf]
    %v749 = vld [vmem:[%s3 + $0x8] sm:$0xf]
    %v750 = vld [vmem:[%s3 + $0xc] sm:$0xf]
    %v751 = vld [vmem:[%s3 + $0x10] sm:$0xf]
    %v752 = vld [vmem:[%s3 + $0x14] sm:$0xf]
    %v753 = vld [vmem:[%s3 + $0x18] sm:$0xf]
    %v754 = vld [vmem:[%s3 + $0x1c] sm:$0xf]
    %v755 = vld [vmem:[%s3 + $0x20] sm:$0xf]
    %v756 = vld [vmem:[%s3 + $0x24] sm:$0xf]
    %v757 = vld [vmem:[%s3 + $0x28] sm:$0xf]
    %v758 = vld [vmem:[%s3 + $0x2c] sm:$0xf]
    %v759 = vld [vmem:[%s3 + $0x30] sm:$0xf]
    %v760 = vld [vmem:[%s3 + $0x34] sm:$0xf]
    %v761 = vld [vmem:[%s3 + $0x38] sm:$0xf]
    %v762 = vld [vmem:[%s3 + $0x3c] sm:$0xf]
    %v763 = vld [vmem:[%s4] sm:$0x1]
    %v765 = vlaneseq
    %v766 = vshrl.u32 %v765, 7
    %v767 = vsub.s32 0, %v766
    %v768 = vrot.slane %v763, %v767
    %v786 = vunpack.c.l.b16 %v747
    %v787 = vunpack.c.l.b16 %v748
    %v788 = vunpack.c.l.b16 %v749
    %v789 = vunpack.c.l.b16 %v750
    %v790 = vunpack.c.l.b16 %v751
    %v791 = vunpack.c.l.b16 %v752
    %v792 = vunpack.c.l.b16 %v753
    %v793 = vunpack.c.l.b16 %v754
    %v794 = vunpack.c.l.b16 %v755
    %v795 = vunpack.c.l.b16 %v756
    %v796 = vunpack.c.l.b16 %v757
    %v797 = vunpack.c.l.b16 %v758
    %v798 = vunpack.c.l.b16 %v759
    %v799 = vunpack.c.l.b16 %v760
    %v800 = vunpack.c.l.b16 %v761
    %v801 = vunpack.c.l.b16 %v762
    %v802 = vpack.c.b16 %v787, %v786
    %v803 = vpack.c.b16 %v789, %v788
    %v804 = vpack.c.b16 %v791, %v790
    %v805 = vpack.c.b16 %v793, %v792
    %v806 = vpack.c.b16 %v795, %v794
    %v807 = vpack.c.b16 %v797, %v796
    %v808 = vpack.c.b16 %v799, %v798
    %v809 = vpack.c.b16 %v801, %v800
    %818 = vmatprep.subr.bf16.mxu0 0
    %819 = vmatpush1.bf16.msra.mxu0 %v802
    %820 = vmatprep.subr.bf16.mxu0 0
    %821 = vmatpush1.bf16.msra.mxu0 %v803
    %822 = vmatprep.subr.bf16.mxu0 0
    %823 = vmatpush1.bf16.msra.mxu0 %v804
    %824 = vmatprep.subr.bf16.mxu0 0
    %825 = vmatpush1.bf16.msra.mxu0 %v805
    %826 = vmatprep.subr.bf16.mxu0 0
    %827 = vmatpush1.bf16.msra.mxu0 %v806
    %828 = vmatprep.subr.bf16.mxu0 0
    %829 = vmatpush1.bf16.msra.mxu0 %v807
    %830 = vmatprep.subr.bf16.mxu0 0
    %831 = vmatpush1.bf16.msra.mxu0 %v808
    %832 = vmatprep.subr.bf16.mxu0 0
    %833 = vmatpush1.bf16.msra.mxu0 %v809
    %834 = vmatprep.subr.bf16.mxu0 0
    %835 = vmatpush1.bf16.msra.mxu0 0
    %836 = vmatprep.subr.bf16.mxu0 0
    %837 = vmatpush1.bf16.msra.mxu0 0
    %838 = vmatprep.subr.bf16.mxu0 0
    %839 = vmatpush1.bf16.msra.mxu0 0
    %840 = vmatprep.subr.bf16.mxu0 0
    %841 = vmatpush1.bf16.msra.mxu0 0
    %842 = vmatprep.subr.bf16.mxu0 0
    %843 = vmatpush1.bf16.msra.mxu0 0
    %844 = vmatprep.subr.bf16.mxu0 0
    %845 = vmatpush1.bf16.msra.mxu0 0
    %846 = vmatprep.subr.bf16.mxu0 0
    %847 = vmatpush1.bf16.msra.mxu0 0
    %848 = vmatprep.subr.bf16.mxu0 0
    %849 = vmatpush1.bf16.msra.mxu0 0
    %850 = vmatprep.mubr.bf16.mxu0 0
    %851 = vmatmul.mubr.bf16.gmra.mrb[0].mxu0 %v746
    %v852 = vpop.f32.mrb[0].mxu0
    %v853 = vadd.f32 %v768, %v852
    %v854 = vpop.f32.mrb[0].mxu0
    %v855 = vpop.f32.mrb[0].mxu0
    %v856 = vpop.f32.mrb[0].mxu0
    %857 = vdwg.mxu0
    %858 = vst [vmem:[%s5] sm:$0xff] %v853
  $region29: #{_lin_model_forward.1} parent=0 // pred_fallthru
    _
  // Predicated region
  $region30: #{_lin_model_forward.1} parent=0 // pred_check
    _
  $region31: #{_lin_model_forward.1} parent=0 // pred_check_branch
    %860 = sbr.rel (0) target = $region33
  $region32: #{_lin_model_forward.1} parent=0 // pred_region
    _
  $region33: #{_lin_model_forward.1} parent=0 // pred_fallthru
    _
  // Predicated region
  $region34: #{_lin_model_forward.1} parent=0 // pred_check
    _
  $region35: #{_lin_model_forward.1} parent=0 // pred_check_branch
    %862 = sbr.rel (0) target = $region37
  $region36: #{_lin_model_forward.1} parent=0 // pred_region
    _
  $region37: #{_lin_model_forward.1} parent=0 // pred_fallthru
    _

</llo_original>
